<compile_context>
chip_gen: v7x
topology: tpu7x:2x2x1
jax: 0.10.0
libtpu: 0.0.40
codegen_flags: <defaults>
</compile_context>

<pallas_src>
import functools

import jax
import jax.numpy as jnp
from jax import lax
from jax.experimental import pallas as pl
from jax.experimental.pallas import tpu as pltpu


_LANES = 2048          # lane width of the flattened element layout (multiple of 128)
_HIST_TILE_ROWS = 32   # rows per histogram grid step: 32 * 2048 f32 = 256 KiB / operand
_MM_TILE_ROWS = 256    # preferred rows per min/max grid step (2 MiB / operand)
_UNROLL = 4            # inner-row unroll: overlap one-hot build with the MXU matmul
_EPS = 1e-8            # matches the PyTorch reference epsilon
_VMEM_LIMIT = 32 * 1024 * 1024


def _cdiv(a, b):
    return -(-a // b)


def _device_kind():
    try:
        return jax.devices()[0].device_kind.lower()
    except Exception:
        return ""


# -------------------- one-hot dtype selection (probed once) ----------------- #

_ONEHOT_CONFIG = None


def _probe_int8_kernel(xb_ref, yb_ref, o_ref):
    bins = lax.broadcasted_iota(jnp.int32, (256, 1), 0)
    oa = (bins == xb_ref[...]).astype(jnp.int8)
    ob = (bins == yb_ref[...]).astype(jnp.int8)
    o_ref[...] = lax.dot_general(
        oa, ob, dimension_numbers=(((1,), (1,)), ((), ())),
        preferred_element_type=jnp.int32)


def _onehot_config():
    """(one_hot_dtype, accumulator_dtype) for the histogram matmul.

    int8 x int8 -> int32 on v5e/v6e (approx. 2x MXU rate vs bf16, half the
    operand traffic, exact counts).  The int8 path is feature-probed once with
    a tiny kernel so an unsupported lowering (e.g. transposed-rhs int8 matmul)
    falls back to the always-working bf16 -> f32 path instead of failing.
    """
    global _ONEHOT_CONFIG
    if _ONEHOT_CONFIG is not None:
        return _ONEHOT_CONFIG
    kind = _device_kind()
    cfg = (jnp.bfloat16, jnp.float32)
    # TODO(synk): on v7x try float8_e4m3 one-hots (no int MXU path there); needs a
    #   bundle/roofline check on hardware before committing.
    if ("v5" in kind) or ("v6" in kind):
        try:
            out = pl.pallas_call(
                _probe_int8_kernel,
                out_shape=jax.ShapeDtypeStruct((256, 256), jnp.int32),
            )(jnp.zeros((1, 512), jnp.int32), jnp.zeros((1, 512), jnp.int32))
            jax.block_until_ready(out)
            cfg = (jnp.int8, jnp.int32)
        except Exception:
            cfg = (jnp.bfloat16, jnp.float32)
    _ONEHOT_CONFIG = cfg
    return cfg


# ------------------------------ min / max ---------------------------------- #

def _minmax_kernel(x_ref, y_ref, xmin_ref, xscale_ref, ymin_ref, yscale_ref, *,
                   num_bins):
    step = pl.program_id(0)

    @pl.when(step == 0)
    def _():
        xmin_ref[...] = jnp.full((1, 1), jnp.inf, jnp.float32)
        xscale_ref[...] = jnp.full((1, 1), -jnp.inf, jnp.float32)   # running max(x)
        ymin_ref[...] = jnp.full((1, 1), jnp.inf, jnp.float32)
        yscale_ref[...] = jnp.full((1, 1), -jnp.inf, jnp.float32)   # running max(y)

    xt = x_ref[...]
    yt = y_ref[...]
    xmin_ref[...] = jnp.minimum(xmin_ref[...], jnp.min(xt, keepdims=True))
    xscale_ref[...] = jnp.maximum(xscale_ref[...], jnp.max(xt, keepdims=True))
    ymin_ref[...] = jnp.minimum(ymin_ref[...], jnp.min(yt, keepdims=True))
    yscale_ref[...] = jnp.maximum(yscale_ref[...], jnp.max(yt, keepdims=True))

    @pl.when(step == pl.num_programs(0) - 1)
    def _():
        # Epilogue folds the whole binning affine into the outputs: the hot
        # histogram loop then does a single (x - min) * scale per element and
        # the wrapper needs no extra XLA ops between the two Pallas calls.
        xscale_ref[...] = num_bins / (xscale_ref[...] - xmin_ref[...] + _EPS)
        yscale_ref[...] = num_bins / (yscale_ref[...] - ymin_ref[...] + _EPS)


def _minmax_stats(x2, y2, mm_tile, num_bins):
    rows_p, lanes = x2.shape
    n_tiles = rows_p // mm_tile
    tile_spec = pl.BlockSpec((mm_tile, lanes), lambda i: (i, 0))
    out_spec = pl.BlockSpec((1, 1), lambda i: (0, 0))
    kernel = functools.partial(_minmax_kernel, num_bins=num_bins)
    return pl.pallas_call(
        kernel,
        out_shape=tuple(jax.ShapeDtypeStruct((1, 1), jnp.float32) for _ in range(4)),
        grid=(n_tiles,),
        in_specs=[tile_spec, tile_spec],
        out_specs=(out_spec, out_spec, out_spec, out_spec),
        compiler_params=pltpu.CompilerParams(
            dimension_semantics=("arbitrary",),
            vmem_limit_bytes=_VMEM_LIMIT),
        cost_estimate=pl.CostEstimate(
            flops=4 * rows_p * lanes,
            transcendentals=0,
            bytes_accessed=2 * rows_p * lanes * 4 + 16),
    )(x2, y2)


# ---------------------------- joint histogram ------------------------------ #

def _hist_kernel(xmin_ref, xscale_ref, ymin_ref, yscale_ref, x_ref, y_ref,
                 hist_ref, *, num_bins, tile_rows, lanes, inner_grid, total,
                 onehot_dtype, acc_dtype, unroll):
    c = pl.program_id(0)          # "parallel" partial-histogram axis (v7x megacore)
    k = pl.program_id(1)          # "arbitrary" reduction axis

    @pl.when(k == 0)
    def _():
        hist_ref[...] = jnp.zeros_like(hist_ref)

    # SMEM scalars; the scale already includes the *num_bins fold.
    x_min = xmin_ref[0, 0]
    x_scale = xscale_ref[0, 0]
    y_min = ymin_ref[0, 0]
    y_scale = yscale_ref[0, 0]

    bins = lax.broadcasted_iota(jnp.int32, (num_bins, 1), 0)   # (B, 1)
    lane = lax.broadcasted_iota(jnp.int32, (1, lanes), 1)      # (1, L)
    base = (c * inner_grid + k) * (tile_rows * lanes)          # first element of tile

    def body(r, carry):
        xs = x_ref[pl.ds(r, 1), :]                             # (1, L) f32
        ys = y_ref[pl.ds(r, 1), :]
        xb = jnp.clip(jnp.floor((xs - x_min) * x_scale),
                      0.0, num_bins - 1.0).astype(jnp.int32)
        yb = jnp.clip(jnp.floor((ys - y_min) * y_scale),
                      0.0, num_bins - 1.0).astype(jnp.int32)
        # Mask the padded tail on the x side only: a zeroed x one-hot column
        # removes the element from the joint histogram (and hence from both
        # marginals, which are its row/col sums).
        valid = (base + r * lanes + lane) < total
        xb = jnp.where(valid, xb, -1)
        one_hot_x = (bins == xb).astype(onehot_dtype)          # (B, L)
        one_hot_y = (bins == yb).astype(onehot_dtype)          # (B, L)
        # hist[i, j] += #{e : x_e in bin i and y_e in bin j}.  Scatter-free
        # histogram on the MXU (int8->int32 on v5e/v6e, bf16->f32 elsewhere).
        # TODO(synk): if a bundle dump shows a materialized vxpose for the rhs of
        #   this A.B^T contraction, switch one_hot_y to (L, B) built from a
        #   transposed (L, 1) index column and contract (B,L)x(L,B) instead.
        hist_ref[...] += lax.dot_general(
            one_hot_x, one_hot_y,
            dimension_numbers=(((1,), (1,)), ((), ())),
            preferred_element_type=acc_dtype)
        return carry

    # Partial unroll so row r+1's VPU one-hot build overlaps row r's MXU matmul.
    lax.fori_loop(0, tile_rows, body, 0, unroll=unroll)


def _joint_histogram(stats, x2, y2, total, num_bins, tile_rows, n_par, inner_grid,
                     onehot_dtype, acc_dtype):
    rows_p, lanes = x2.shape
    kernel = functools.partial(
        _hist_kernel, num_bins=num_bins, tile_rows=tile_rows, lanes=lanes,
        inner_grid=inner_grid, total=total, onehot_dtype=onehot_dtype,
        acc_dtype=acc_dtype, unroll=max(1, min(_UNROLL, tile_rows)))
    smem_spec = pl.BlockSpec(memory_space=pltpu.MemorySpace.SMEM)
    data_spec = pl.BlockSpec((tile_rows, lanes),
                             lambda c, k: (c * inner_grid + k, 0))
    return pl.pallas_call(
        kernel,
        out_shape=jax.ShapeDtypeStruct((n_par, num_bins, num_bins), acc_dtype),
        grid=(n_par, inner_grid),
        in_specs=[smem_spec, smem_spec, smem_spec, smem_spec, data_spec, data_spec],
        out_specs=pl.BlockSpec((None, num_bins, num_bins), lambda c, k: (c, 0, 0)),
        compiler_params=pltpu.CompilerParams(
            dimension_semantics=("parallel", "arbitrary"),
            vmem_limit_bytes=_VMEM_LIMIT),
        cost_estimate=pl.CostEstimate(
            flops=2 * num_bins * num_bins * rows_p * lanes,
            transcendentals=0,
            bytes_accessed=2 * rows_p * lanes * 4
                           + n_par * num_bins * num_bins * 4 + 16),
    )(*stats, x2, y2)


# ------------------------- MI from the histogram ---------------------------- #

def _mi_kernel(hist_ref, out_ref, *, inv_count, normalized):
    h = jnp.sum(hist_ref[...].astype(jnp.float32), axis=0)   # (B, B) counts
    p_xy = h * inv_count
    p_x = jnp.sum(p_xy, axis=1, keepdims=True)    # (B, 1)  == reference hist_x / N
    p_y = jnp.sum(p_xy, axis=0, keepdims=True)    # (1, B)  == reference hist_y / N
    valid = (p_xy > 0.0) & (p_x > 0.0) & (p_y > 0.0)
    p_xy_safe = jnp.where(valid, p_xy, 1.0)
    denom_safe = jnp.where(valid, p_x * p_y, 1.0)
    mi = jnp.sum(jnp.where(valid, p_xy * jnp.log(p_xy_safe / denom_safe), 0.0))
    if normalized:
        h_x = -jnp.sum(p_x * jnp.log(p_x + _EPS))
        h_y = -jnp.sum(p_y * jnp.log(p_y + _EPS))
        mi = mi / (jnp.sqrt(h_x * h_y) + _EPS)
    out_ref[...] = jnp.reshape(-mi, (1, 1))


def _mi_from_hist(hist, total, normalized):
    n_par, num_bins, _ = hist.shape
    kernel = functools.partial(_mi_kernel, inv_count=1.0 / float(total),
                               normalized=normalized)
    out = pl.pallas_call(
        kernel,
        out_shape=jax.ShapeDtypeStruct((1, 1), jnp.float32),
        grid=(1,),
        in_specs=[pl.BlockSpec((n_par, num_bins, num_bins), lambda i: (0, 0, 0))],
        out_specs=pl.BlockSpec((1, 1), lambda i: (0, 0)),
        compiler_params=pltpu.CompilerParams(dimension_semantics=("arbitrary",)),
        cost_estimate=pl.CostEstimate(
            flops=12 * num_bins * num_bins,
            transcendentals=3 * num_bins * num_bins,
            bytes_accessed=n_par * num_bins * num_bins * 4 + 4),
    )(hist)
    return out[0, 0]


# --------------------------------- glue ------------------------------------ #

def _prepare(x, y, use_megacore):
    xf = jnp.asarray(x, jnp.float32).reshape(-1)
    yf = jnp.asarray(y, jnp.float32).reshape(-1)
    total = int(xf.shape[0])
    rows = max(1, _cdiv(total, _LANES))
    if rows <= _HIST_TILE_ROWS:
        hist_tile = rows          # single block == full array (exempt from 8-row rule)
        n_par, inner_grid = 1, 1
        rows_p = rows
    else:
        hist_tile = _HIST_TILE_ROWS
        n_tiles = _cdiv(rows, hist_tile)
        # Partial-histogram "parallel" axis only pays off on v7x (2 TCs/chip).
        n_par = 2 if (use_megacore and n_tiles >= 8) else 1
        inner_grid = _cdiv(n_tiles, n_par)
        rows_p = n_par * inner_grid * hist_tile
    # The mem-bound min/max pass gets its own, larger tile (amortizes the
    # ~0.35us per-grid-step overhead); pick the largest divisor of rows_p.
    mm_tile = rows_p
    for cand in (_MM_TILE_ROWS, 128, 64, _HIST_TILE_ROWS):
        if rows_p % cand == 0:
            mm_tile = cand
            break
    pad = rows_p * _LANES - total
    if pad:
        # Edge padding keeps min/max exact without any in-kernel masking; the
        # histogram kernel masks the tail out of the counts.
        # TODO(synk): this is one extra HBM copy per operand; removing it needs
        #   manual ragged DMA (pl.ANY + make_async_copy) since a copy-free
        #   reshape to (rows, _LANES) requires a divisible element count.
        xf = jnp.pad(xf, (0, pad), mode="edge")
        yf = jnp.pad(yf, (0, pad), mode="edge")
    return (xf.reshape(rows_p, _LANES), yf.reshape(rows_p, _LANES),
            total, hist_tile, mm_tile, n_par, inner_grid)


def mutual_information_loss(x, y, num_bins=256, sigma=1.0, normalized=True):
    """Forward of MutualInformationLoss: returns -MI(x, y) as a () float32."""
    # TODO(synk): `sigma` is accepted for API parity but -- exactly as in the
    #   PyTorch reference forward -- it is never used (hard binning, no Parzen window).
    del sigma
    if x.shape != y.shape:
        raise ValueError("x and y must have identical shapes")
    kind = _device_kind()
    onehot_dtype, acc_dtype = _onehot_config()
    x2, y2, total, hist_tile, mm_tile, n_par, inner_grid = _prepare(
        x, y, use_megacore=("v7" in kind))
    stats = _minmax_stats(x2, y2, mm_tile, num_bins)   # (x_min, x_scale, y_min, y_scale)
    hist = _joint_histogram(stats, x2, y2, total, num_bins, hist_tile,
                            n_par, inner_grid, onehot_dtype, acc_dtype)
    return _mi_from_hist(hist, total, normalized)


if __name__ == "__main__":
    key = jax.random.PRNGKey(0)
    kx, kn = jax.random.split(key)
    x = jax.random.normal(kx, (16, 16), jnp.float32)
    y = 0.7 * x + 0.3 * jax.random.normal(kn, (16, 16), jnp.float32)  # correlated pair

    loss = mutual_information_loss(x, y, num_bins=256, sigma=1.0, normalized=True)
    loss = jax.block_until_ready(loss)
    assert loss.shape == () and bool(jnp.isfinite(loss))
    print("KERNEL_OK")
</pallas_src>

<mosaic_0001>
module attributes {stable_mosaic.version = 11 : i64} {
  func.func @_minmax_kernel(%arg0: i32, %arg1: memref<1x2048xf32, #tpu.memory_space<vmem>>, %arg2: memref<1x2048xf32, #tpu.memory_space<vmem>>, %arg3: memref<1x1xf32, #tpu.memory_space<vmem>>, %arg4: memref<1x1xf32, #tpu.memory_space<vmem>>, %arg5: memref<1x1xf32, #tpu.memory_space<vmem>>, %arg6: memref<1x1xf32, #tpu.memory_space<vmem>>) attributes {dimension_semantics = [#tpu.dimension_semantics<arbitrary>], iteration_bounds = array<i64: 1>, scalar_prefetch = 0 : i64, scratch_operands = 0 : i64, tpu.core_type = #tpu.core_type<tc>, window_params = [{transform_indices = @transform_0, window_bounds = array<i64: 1, 2048>}, {transform_indices = @transform_1, window_bounds = array<i64: 1, 2048>}, {pipeline_mode = #tpu.pipeline_mode<synchronous>, transform_indices = @transform_2, window_bounds = array<i64: 1, 1>}, {pipeline_mode = #tpu.pipeline_mode<synchronous>, transform_indices = @transform_3, window_bounds = array<i64: 1, 1>}, {pipeline_mode = #tpu.pipeline_mode<synchronous>, transform_indices = @transform_4, window_bounds = array<i64: 1, 1>}, {pipeline_mode = #tpu.pipeline_mode<synchronous>, transform_indices = @transform_5, window_bounds = array<i64: 1, 1>}]} {
    %c0_i32 = arith.constant 0 : i32
    %0 = arith.cmpi eq, %arg0, %c0_i32 : i32
    %1 = arith.extui %0 : i1 to i32
    %c0_i32_0 = arith.constant 0 : i32
    %2 = arith.cmpi ne, %1, %c0_i32_0 : i32
    scf.if %2 {
      %cst_25 = arith.constant 0x7F800000 : f32
      %40 = vector.broadcast %cst_25 : f32 to vector<1x1xf32>
      %c0_26 = arith.constant 0 : index
      %c0_27 = arith.constant 0 : index
      %41 = vector.load %arg3[%c0_26, %c0_27] : memref<1x1xf32, #tpu.memory_space<vmem>>, vector<1x1xf32>
      tpu.vector_store %arg3[%c0_26, %c0_27], %40 {strides = array<i32>} : memref<1x1xf32, #tpu.memory_space<vmem>>, vector<1x1xf32>,
      %cst_28 = arith.constant 0xFF800000 : f32
      %42 = vector.broadcast %cst_28 : f32 to vector<1x1xf32>
      %c0_29 = arith.constant 0 : index
      %c0_30 = arith.constant 0 : index
      %43 = vector.load %arg4[%c0_29, %c0_30] : memref<1x1xf32, #tpu.memory_space<vmem>>, vector<1x1xf32>
      tpu.vector_store %arg4[%c0_29, %c0_30], %42 {strides = array<i32>} : memref<1x1xf32, #tpu.memory_space<vmem>>, vector<1x1xf32>,
      %cst_31 = arith.constant 0x7F800000 : f32
      %44 = vector.broadcast %cst_31 : f32 to vector<1x1xf32>
      %c0_32 = arith.constant 0 : index
      %c0_33 = arith.constant 0 : index
      %45 = vector.load %arg5[%c0_32, %c0_33] : memref<1x1xf32, #tpu.memory_space<vmem>>, vector<1x1xf32>
      tpu.vector_store %arg5[%c0_32, %c0_33], %44 {strides = array<i32>} : memref<1x1xf32, #tpu.memory_space<vmem>>, vector<1x1xf32>,
      %cst_34 = arith.constant 0xFF800000 : f32
      %46 = vector.broadcast %cst_34 : f32 to vector<1x1xf32>
      %c0_35 = arith.constant 0 : index
      %c0_36 = arith.constant 0 : index
      %47 = vector.load %arg6[%c0_35, %c0_36] : memref<1x1xf32, #tpu.memory_space<vmem>>, vector<1x1xf32>
      tpu.vector_store %arg6[%c0_35, %c0_36], %46 {strides = array<i32>} : memref<1x1xf32, #tpu.memory_space<vmem>>, vector<1x1xf32>,
    } else {
    }
    %c0 = arith.constant 0 : index
    %c0_1 = arith.constant 0 : index
    %3 = vector.load %arg1[%c0, %c0_1] : memref<1x2048xf32, #tpu.memory_space<vmem>>, vector<1x2048xf32>
    %c0_2 = arith.constant 0 : index
    %c0_3 = arith.constant 0 : index
    %4 = vector.load %arg2[%c0_2, %c0_3] : memref<1x2048xf32, #tpu.memory_space<vmem>>, vector<1x2048xf32>
    %c0_4 = arith.constant 0 : index
    %c0_5 = arith.constant 0 : index
    %5 = vector.load %arg3[%c0_4, %c0_5] : memref<1x1xf32, #tpu.memory_space<vmem>>, vector<1x1xf32>
    %6 = vector.shape_cast %3 : vector<1x2048xf32> to vector<1x1x2048xf32>
    %cst = arith.constant dense<0x7F800000> : vector<1xf32>
    %7 = vector.multi_reduction <minimumf>, %6, %cst [1, 2] : vector<1x1x2048xf32> to vector<1xf32>
    %8 = vector.shape_cast %7 : vector<1xf32> to vector<1x1x1xf32>
    %9 = vector.extract %8[0, 0, 0] : f32 from vector<1x1x1xf32>
    %10 = vector.broadcast %9 : f32 to vector<1x1xf32>
    %11 = arith.minimumf %5, %10 : vector<1x1xf32>
    %c0_6 = arith.constant 0 : index
    %c0_7 = arith.constant 0 : index
    %12 = vector.load %arg3[%c0_6, %c0_7] : memref<1x1xf32, #tpu.memory_space<vmem>>, vector<1x1xf32>
    tpu.vector_store %arg3[%c0_6, %c0_7], %11 {strides = array<i32>} : memref<1x1xf32, #tpu.memory_space<vmem>>, vector<1x1xf32>,
    %c0_8 = arith.constant 0 : index
    %c0_9 = arith.constant 0 : index
    %13 = vector.load %arg4[%c0_8, %c0_9] : memref<1x1xf32, #tpu.memory_space<vmem>>, vector<1x1xf32>
    %14 = vector.shape_cast %3 : vector<1x2048xf32> to vector<1x1x2048xf32>
    %cst_10 = arith.constant dense<0xFF800000> : vector<1xf32>
    %15 = vector.multi_reduction <maximumf>, %14, %cst_10 [1, 2] : vector<1x1x2048xf32> to vector<1xf32>
    %16 = vector.shape_cast %15 : vector<1xf32> to vector<1x1x1xf32>
    %17 = vector.extract %16[0, 0, 0] : f32 from vector<1x1x1xf32>
    %18 = vector.broadcast %17 : f32 to vector<1x1xf32>
    %19 = arith.maximumf %13, %18 : vector<1x1xf32>
    %c0_11 = arith.constant 0 : index
    %c0_12 = arith.constant 0 : index
    %20 = vector.load %arg4[%c0_11, %c0_12] : memref<1x1xf32, #tpu.memory_space<vmem>>, vector<1x1xf32>
    tpu.vector_store %arg4[%c0_11, %c0_12], %19 {strides = array<i32>} : memref<1x1xf32, #tpu.memory_space<vmem>>, vector<1x1xf32>,
    %c0_13 = arith.constant 0 : index
    %c0_14 = arith.constant 0 : index
    %21 = vector.load %arg5[%c0_13, %c0_14] : memref<1x1xf32, #tpu.memory_space<vmem>>, vector<1x1xf32>
    %22 = vector.shape_cast %4 : vector<1x2048xf32> to vector<1x1x2048xf32>
    %cst_15 = arith.constant dense<0x7F800000> : vector<1xf32>
    %23 = vector.multi_reduction <minimumf>, %22, %cst_15 [1, 2] : vector<1x1x2048xf32> to vector<1xf32>
    %24 = vector.shape_cast %23 : vector<1xf32> to vector<1x1x1xf32>
    %25 = vector.extract %24[0, 0, 0] : f32 from vector<1x1x1xf32>
    %26 = vector.broadcast %25 : f32 to vector<1x1xf32>
    %27 = arith.minimumf %21, %26 : vector<1x1xf32>
    %c0_16 = arith.constant 0 : index
    %c0_17 = arith.constant 0 : index
    %28 = vector.load %arg5[%c0_16, %c0_17] : memref<1x1xf32, #tpu.memory_space<vmem>>, vector<1x1xf32>
    tpu.vector_store %arg5[%c0_16, %c0_17], %27 {strides = array<i32>} : memref<1x1xf32, #tpu.memory_space<vmem>>, vector<1x1xf32>,
    %c0_18 = arith.constant 0 : index
    %c0_19 = arith.constant 0 : index
    %29 = vector.load %arg6[%c0_18, %c0_19] : memref<1x1xf32, #tpu.memory_space<vmem>>, vector<1x1xf32>
    %30 = vector.shape_cast %4 : vector<1x2048xf32> to vector<1x1x2048xf32>
    %cst_20 = arith.constant dense<0xFF800000> : vector<1xf32>
    %31 = vector.multi_reduction <maximumf>, %30, %cst_20 [1, 2] : vector<1x1x2048xf32> to vector<1xf32>
    %32 = vector.shape_cast %31 : vector<1xf32> to vector<1x1x1xf32>
    %33 = vector.extract %32[0, 0, 0] : f32 from vector<1x1x1xf32>
    %34 = vector.broadcast %33 : f32 to vector<1x1xf32>
    %35 = arith.maximumf %29, %34 : vector<1x1xf32>
    %c0_21 = arith.constant 0 : index
    %c0_22 = arith.constant 0 : index
    %36 = vector.load %arg6[%c0_21, %c0_22] : memref<1x1xf32, #tpu.memory_space<vmem>>, vector<1x1xf32>
    tpu.vector_store %arg6[%c0_21, %c0_22], %35 {strides = array<i32>} : memref<1x1xf32, #tpu.memory_space<vmem>>, vector<1x1xf32>,
    %c0_i32_23 = arith.constant 0 : i32
    %37 = arith.cmpi eq, %arg0, %c0_i32_23 : i32
    %38 = arith.extui %37 : i1 to i32
    %c0_i32_24 = arith.constant 0 : i32
    %39 = arith.cmpi ne, %38, %c0_i32_24 : i32
    scf.if %39 {
      %c0_25 = arith.constant 0 : index
      %c0_26 = arith.constant 0 : index
      %40 = vector.load %arg4[%c0_25, %c0_26] : memref<1x1xf32, #tpu.memory_space<vmem>>, vector<1x1xf32>
      %c0_27 = arith.constant 0 : index
      %c0_28 = arith.constant 0 : index
      %41 = vector.load %arg3[%c0_27, %c0_28] : memref<1x1xf32, #tpu.memory_space<vmem>>, vector<1x1xf32>
      %42 = arith.subf %40, %41 : vector<1x1xf32>
      %cst_29 = arith.constant 9.99999993E-9 : f32
      %43 = vector.broadcast %cst_29 : f32 to vector<1x1xf32>
      %44 = arith.addf %42, %43 : vector<1x1xf32>
      %cst_30 = arith.constant 2.560000e+02 : f32
      %45 = vector.broadcast %cst_30 : f32 to vector<1x1xf32>
      %46 = arith.divf %45, %44 : vector<1x1xf32>
      %c0_31 = arith.constant 0 : index
      %c0_32 = arith.constant 0 : index
      %47 = vector.load %arg4[%c0_31, %c0_32] : memref<1x1xf32, #tpu.memory_space<vmem>>, vector<1x1xf32>
      tpu.vector_store %arg4[%c0_31, %c0_32], %46 {strides = array<i32>} : memref<1x1xf32, #tpu.memory_space<vmem>>, vector<1x1xf32>,
      %c0_33 = arith.constant 0 : index
      %c0_34 = arith.constant 0 : index
      %48 = vector.load %arg6[%c0_33, %c0_34] : memref<1x1xf32, #tpu.memory_space<vmem>>, vector<1x1xf32>
      %c0_35 = arith.constant 0 : index
      %c0_36 = arith.constant 0 : index
      %49 = vector.load %arg5[%c0_35, %c0_36] : memref<1x1xf32, #tpu.memory_space<vmem>>, vector<1x1xf32>
      %50 = arith.subf %48, %49 : vector<1x1xf32>
      %cst_37 = arith.constant 9.99999993E-9 : f32
      %51 = vector.broadcast %cst_37 : f32 to vector<1x1xf32>
      %52 = arith.addf %50, %51 : vector<1x1xf32>
      %cst_38 = arith.constant 2.560000e+02 : f32
      %53 = vector.broadcast %cst_38 : f32 to vector<1x1xf32>
      %54 = arith.divf %53, %52 : vector<1x1xf32>
      %c0_39 = arith.constant 0 : index
      %c0_40 = arith.constant 0 : index
      %55 = vector.load %arg6[%c0_39, %c0_40] : memref<1x1xf32, #tpu.memory_space<vmem>>, vector<1x1xf32>
      tpu.vector_store %arg6[%c0_39, %c0_40], %54 {strides = array<i32>} : memref<1x1xf32, #tpu.memory_space<vmem>>, vector<1x1xf32>,
    } else {
    }
    return
  }
  func.func @transform_0(%arg0: i32) -> (i32, i32) {
    %c0_i32 = arith.constant 0 : i32
    %c0_i32_0 = arith.constant 0 : i32
    return %arg0, %c0_i32 : i32, i32
  }
  func.func @transform_1(%arg0: i32) -> (i32, i32) {
    %c0_i32 = arith.constant 0 : i32
    %c0_i32_0 = arith.constant 0 : i32
    return %arg0, %c0_i32 : i32, i32
  }
  func.func @transform_2(%arg0: i32) -> (i32, i32) {
    %c0_i32 = arith.constant 0 : i32
    %c0_i32_0 = arith.constant 0 : i32
    %c0_i32_1 = arith.constant 0 : i32
    return %c0_i32, %c0_i32_0 : i32, i32
  }
  func.func @transform_3(%arg0: i32) -> (i32, i32) {
    %c0_i32 = arith.constant 0 : i32
    %c0_i32_0 = arith.constant 0 : i32
    %c0_i32_1 = arith.constant 0 : i32
    return %c0_i32, %c0_i32_0 : i32, i32
  }
  func.func @transform_4(%arg0: i32) -> (i32, i32) {
    %c0_i32 = arith.constant 0 : i32
    %c0_i32_0 = arith.constant 0 : i32
    %c0_i32_1 = arith.constant 0 : i32
    return %c0_i32, %c0_i32_0 : i32, i32
  }
  func.func @transform_5(%arg0: i32) -> (i32, i32) {
    %c0_i32 = arith.constant 0 : i32
    %c0_i32_0 = arith.constant 0 : i32
    %c0_i32_1 = arith.constant 0 : i32
    return %c0_i32, %c0_i32_0 : i32, i32
  }
}

</mosaic_0001>

<llo_original>
// kernel: tpu_custom_call.1
$region0: #{tpu_custom_call.1}
  #allocation0 [shape = 'u32[]', space=smem, size = 0x4, offset = 0x4, fixed_abs, tag = 'smem constant byte address 0x4 - core index']
  #allocation1 [shape = 'u32[144,128]{1,0:T(1,128)}', space=vmem, size = 0x12000, scoped, tag = 'internal scratch']
  %s0 = inlined_call_operand.hbm [shape: f32[1,2048], index: 0, kind: input, shape index: {}]
  %s1 = inlined_call_operand.hbm [shape: f32[1,2048], index: 1, kind: input, shape index: {}]
  %s2 = inlined_call_operand.hbm [shape: f32[1,1], index: 2, kind: output, shape index: {0}]
  %s3 = inlined_call_operand.hbm [shape: f32[1,1], index: 3, kind: output, shape index: {1}]
  %s4 = inlined_call_operand.hbm [shape: f32[1,1], index: 4, kind: output, shape index: {2}]
  %s5 = inlined_call_operand.hbm [shape: f32[1,1], index: 5, kind: output, shape index: {3}]
  %6 = xla_tuple %s2, %s3, %s4, %s5
  %s7 = sld [smem:[#allocation0]]
  $region58: #{tpu_custom_call.1} parent=0
    _
  %s9 = ssub.s32 1, %s7
  %s10 = scalar_select 0, %s9, %s7
  $region1: #{tpu_custom_call.1} parent=0
    #allocation2 [shape = 'u8[8192]{0}', space=vmem, size = 0x2000, scoped, tag = 'input window, operand 0, single buffered']
    #allocation3 [shape = 's32[1]{0}', space=sflag, size = 0x4, scoped, tag = 'scoped memory for tpu_custom_call.1']
    #allocation4 [shape = 's32[1]{0}', space=sflag, size = 0x4, scoped, tag = 'scoped memory for tpu_custom_call.1']
    #allocation5 [shape = 'u8[8192]{0}', space=vmem, size = 0x2000, scoped, tag = 'input window, operand 1, single buffered']
    #allocation6 [shape = 's32[1]{0}', space=sflag, size = 0x4, scoped, tag = 'scoped memory for tpu_custom_call.1']
    #allocation7 [shape = 'u8[512]{0}', space=vmem, size = 0x400, scoped, tag = 'output window, operand 0, single buffered']
    #allocation8 [shape = 'u8[512]{0}', space=vmem, size = 0x400, scoped, tag = 'output window, operand 1, single buffered']
    #allocation9 [shape = 's32[1]{0}', space=sflag, size = 0x4, scoped, tag = 'scoped memory for tpu_custom_call.1']
    #allocation10 [shape = 'u8[512]{0}', space=vmem, size = 0x400, scoped, tag = 'output window, operand 2, single buffered']
    #allocation11 [shape = 'u8[512]{0}', space=vmem, size = 0x400, scoped, tag = 'output window, operand 3, single buffered']
    #allocation12 [shape = 's32[1]{0}', space=sflag, size = 0x4, scoped, tag = 'scoped memory for tpu_custom_call.1']
    %11 = vsyncpa [#allocation3], 0
    %12 = vsyncpa [#allocation6], 0
    %13 = vsyncpa [#allocation4], 0
    %14 = vsyncpa [#allocation9], 0
    %15 = vsyncpa [#allocation12], 0
    // Predicated region
    $region2: #{tpu_custom_call.1} parent=1 // pred_check
      _
    $region3: #{tpu_custom_call.1} parent=1 // pred_check_branch
      %17 = sbr.rel (0) target = $region5
    $region4: #{tpu_custom_call.1} parent=1 // pred_region
      %s19 = ssub.s32 256, 256
      %20 = vsyncadd [#allocation3], %s19
      %s22 = sshll.u32 [#allocation2], 4
      %s23 = int_to_ptr.vmem [resolvable:$true] %s22
      %25 = dma.hbm_to_vmem [thread:$0]  %s0, 256, %s23, [#allocation3]
    $region5: #{tpu_custom_call.1} parent=1 // pred_fallthru
      _
    // Predicated region
    $region6: #{tpu_custom_call.1} parent=1 // pred_check
      _
    $region7: #{tpu_custom_call.1} parent=1 // pred_check_branch
      %27 = sbr.rel (0) target = $region9
    $region8: #{tpu_custom_call.1} parent=1 // pred_region
      %s29 = ssub.s32 256, 256
      %30 = vsyncadd [#allocation6], %s29
      %s32 = sshll.u32 [#allocation5], 4
      %s33 = int_to_ptr.vmem [resolvable:$true] %s32
      %35 = dma.hbm_to_vmem [thread:$0]  %s1, 256, %s33, [#allocation6]
    $region9: #{tpu_custom_call.1} parent=1 // pred_fallthru
      _
    // Predicated region
    $region10: #{tpu_custom_call.1} parent=1 // pred_check
      _
    $region11: #{tpu_custom_call.1} parent=1 // pred_check_branch
      %37 = sbr.rel (0) target = $region13
    $region12: #{tpu_custom_call.1} parent=1 // pred_region
      %38 = dma.done [#allocation3], 256
    $region13: #{tpu_custom_call.1} parent=1 // pred_fallthru
      _
    // Predicated region
    $region14: #{tpu_custom_call.1} parent=1 // pred_check
      _
    $region15: #{tpu_custom_call.1} parent=1 // pred_check_branch
      %40 = sbr.rel (0) target = $region17
    $region16: #{tpu_custom_call.1} parent=1 // pred_region
      %41 = dma.done [#allocation6], 256
    $region17: #{tpu_custom_call.1} parent=1 // pred_fallthru
      _
    %p42 = scmp.eq.s32.totalorder 0, 0
    // Predicated region
    $region18: #{tpu_custom_call.1} parent=1 // pred_check
      %p43 = pneg %p42
    $region19: #{tpu_custom_call.1} parent=1 // pred_check_branch
      %45 = sbr.rel (%p43) target = $region21
    $region20: #{tpu_custom_call.1} parent=1 // pred_region
      %vm46 = vcmask 0
      %47 = vst.msk [vmem:[#allocation7] sm:$0x1] %vm46, inf
      %48 = vst.msk [vmem:[#allocation8] sm:$0x1] %vm46, -inf
      %49 = vst.msk [vmem:[#allocation10] sm:$0x1] %vm46, inf
      %50 = vst.msk [vmem:[#allocation11] sm:$0x1] %vm46, -inf
    $region21: #{tpu_custom_call.1} parent=1 // pred_fallthru
      _
    %v51 = vld [vmem:[#allocation2] sm:$0xff]
    %v52 = vld [vmem:[#allocation2 + $0x8] sm:$0xff]
    %v53 = vld [vmem:[#allocation5] sm:$0xff]
    %v54 = vld [vmem:[#allocation5 + $0x8] sm:$0xff]
    %v55 = vld [vmem:[#allocation7] sm:$0x1]
    %v58 = vlaneseq
    %v59 = vshrl.u32 %v58, 7
    %v60 = vsub.s32 0, %v59
    %v61 = vrot.slane %v51, %v60
    %v62 = vlaneseq
    %v63 = vshrl.u32 %v62, 7
    %v64 = vsub.s32 1, %v63
    %v65 = vrot.slane %v51, %v64
    %v66 = vlaneseq
    %v67 = vshrl.u32 %v66, 7
    %v68 = vsub.s32 2, %v67
    %v69 = vrot.slane %v51, %v68
    %v70 = vlaneseq
    %v71 = vshrl.u32 %v70, 7
    %v72 = vsub.s32 3, %v71
    %v73 = vrot.slane %v51, %v72
    %v74 = vlaneseq
    %v75 = vshrl.u32 %v74, 7
    %v76 = vsub.s32 4, %v75
    %v77 = vrot.slane %v51, %v76
    %v78 = vlaneseq
    %v79 = vshrl.u32 %v78, 7
    %v80 = vsub.s32 5, %v79
    %v81 = vrot.slane %v51, %v80
    %v82 = vlaneseq
    %v83 = vshrl.u32 %v82, 7
    %v84 = vsub.s32 6, %v83
    %v85 = vrot.slane %v51, %v84
    %v86 = vlaneseq
    %v87 = vshrl.u32 %v86, 7
    %v88 = vsub.s32 7, %v87
    %v89 = vrot.slane %v51, %v88
    %v90 = vlaneseq
    %v91 = vshrl.u32 %v90, 7
    %v92 = vsub.s32 0, %v91
    %v93 = vrot.slane %v52, %v92
    %v94 = vlaneseq
    %v95 = vshrl.u32 %v94, 7
    %v96 = vsub.s32 1, %v95
    %v97 = vrot.slane %v52, %v96
    %v98 = vlaneseq
    %v99 = vshrl.u32 %v98, 7
    %v100 = vsub.s32 2, %v99
    %v101 = vrot.slane %v52, %v100
    %v102 = vlaneseq
    %v103 = vshrl.u32 %v102, 7
    %v104 = vsub.s32 3, %v103
    %v105 = vrot.slane %v52, %v104
    %v106 = vlaneseq
    %v107 = vshrl.u32 %v106, 7
    %v108 = vsub.s32 4, %v107
    %v109 = vrot.slane %v52, %v108
    %v110 = vlaneseq
    %v111 = vshrl.u32 %v110, 7
    %v112 = vsub.s32 5, %v111
    %v113 = vrot.slane %v52, %v112
    %v114 = vlaneseq
    %v115 = vshrl.u32 %v114, 7
    %v116 = vsub.s32 6, %v115
    %v117 = vrot.slane %v52, %v116
    %v118 = vlaneseq
    %v119 = vshrl.u32 %v118, 7
    %v120 = vsub.s32 7, %v119
    %v121 = vrot.slane %v52, %v120
    %vm138 = vcmask 1040384
    %v139 = vsel %vm138, %v61, inf
    %v140 = vsel %vm138, %v65, inf
    %v141 = vsel %vm138, %v69, inf
    %v142 = vsel %vm138, %v73, inf
    %v143 = vsel %vm138, %v77, inf
    %v144 = vmin.f32 %v139, %v143
    %v145 = vsel %vm138, %v81, inf
    %v146 = vmin.f32 %v140, %v145
    %v147 = vsel %vm138, %v85, inf
    %v148 = vmin.f32 %v141, %v147
    %v149 = vsel %vm138, %v89, inf
    %v150 = vmin.f32 %v142, %v149
    %v151 = vsel %vm138, %v93, inf
    %v152 = vmin.f32 %v144, %v151
    %v153 = vsel %vm138, %v97, inf
    %v154 = vmin.f32 %v146, %v153
    %v155 = vsel %vm138, %v101, inf
    %v156 = vmin.f32 %v148, %v155
    %v157 = vsel %vm138, %v105, inf
    %v158 = vmin.f32 %v150, %v157
    %v159 = vsel %vm138, %v109, inf
    %v160 = vmin.f32 %v152, %v159
    %v161 = vsel %vm138, %v113, inf
    %v162 = vmin.f32 %v154, %v161
    %v163 = vsel %vm138, %v117, inf
    %v164 = vmin.f32 %v156, %v163
    %v165 = vsel %vm138, %v121, inf
    %v166 = vmin.f32 %v158, %v165
    %v167 = vmin.f32 %v160, %v162
    %v168 = vmin.f32 %v164, %v166
    %v169 = vmin.f32 %v167, %v168
    %170 = vmin.xlane.f32.xlu0 %v169
    %v171 = vpop.xlane.xlu0 %170
    %v172 = vrot.slane %v171, 4
    %v173 = vmin.f32 %v171, %v172
    %v174 = vrot.slane %v173, 2
    %v175 = vmin.f32 %v173, %v174
    %v176 = vrot.slane %v175, 1
    %v177 = vmin.f32 %v175, %v176
    %s178 = vtos %v177
    %v179 = vstv %s178
    %v180 = vmin.f32 %v55, %v179
    %vm181 = vcmask 0
    %182 = vst.msk [vmem:[#allocation7] sm:$0x1] %vm181, %v180
    %v183 = vld [vmem:[#allocation8] sm:$0x1]
    %v184 = vsel %vm138, %v61, -inf
    %v185 = vsel %vm138, %v65, -inf
    %v186 = vsel %vm138, %v69, -inf
    %v187 = vsel %vm138, %v73, -inf
    %v188 = vsel %vm138, %v77, -inf
    %v189 = vmax.f32 %v184, %v188
    %v190 = vsel %vm138, %v81, -inf
    %v191 = vmax.f32 %v185, %v190
    %v192 = vsel %vm138, %v85, -inf
    %v193 = vmax.f32 %v186, %v192
    %v194 = vsel %vm138, %v89, -inf
    %v195 = vmax.f32 %v187, %v194
    %v196 = vsel %vm138, %v93, -inf
    %v197 = vmax.f32 %v189, %v196
    %v198 = vsel %vm138, %v97, -inf
    %v199 = vmax.f32 %v191, %v198
    %v200 = vsel %vm138, %v101, -inf
    %v201 = vmax.f32 %v193, %v200
    %v202 = vsel %vm138, %v105, -inf
    %v203 = vmax.f32 %v195, %v202
    %v204 = vsel %vm138, %v109, -inf
    %v205 = vmax.f32 %v197, %v204
    %v206 = vsel %vm138, %v113, -inf
    %v207 = vmax.f32 %v199, %v206
    %v208 = vsel %vm138, %v117, -inf
    %v209 = vmax.f32 %v201, %v208
    %v210 = vsel %vm138, %v121, -inf
    %v211 = vmax.f32 %v203, %v210
    %v212 = vmax.f32 %v205, %v207
    %v213 = vmax.f32 %v209, %v211
    %v214 = vmax.f32 %v212, %v213
    %215 = vmax.xlane.f32.xlu0 %v214
    %v216 = vpop.xlane.xlu0 %215
    %v217 = vrot.slane %v216, 4
    %v218 = vmax.f32 %v216, %v217
    %v219 = vrot.slane %v218, 2
    %v220 = vmax.f32 %v218, %v219
    %v221 = vrot.slane %v220, 1
    %v222 = vmax.f32 %v220, %v221
    %s223 = vtos %v222
    %v224 = vstv %s223
    %v225 = vmax.f32 %v183, %v224
    %226 = vst.msk [vmem:[#allocation8] sm:$0x1] %vm181, %v225
    %v227 = vld [vmem:[#allocation10] sm:$0x1]
    %v230 = vlaneseq
    %v231 = vshrl.u32 %v230, 7
    %v232 = vsub.s32 0, %v231
    %v233 = vrot.slane %v53, %v232
    %v234 = vlaneseq
    %v235 = vshrl.u32 %v234, 7
    %v236 = vsub.s32 1, %v235
    %v237 = vrot.slane %v53, %v236
    %v238 = vlaneseq
    %v239 = vshrl.u32 %v238, 7
    %v240 = vsub.s32 2, %v239
    %v241 = vrot.slane %v53, %v240
    %v242 = vlaneseq
    %v243 = vshrl.u32 %v242, 7
    %v244 = vsub.s32 3, %v243
    %v245 = vrot.slane %v53, %v244
    %v246 = vlaneseq
    %v247 = vshrl.u32 %v246, 7
    %v248 = vsub.s32 4, %v247
    %v249 = vrot.slane %v53, %v248
    %v250 = vlaneseq
    %v251 = vshrl.u32 %v250, 7
    %v252 = vsub.s32 5, %v251
    %v253 = vrot.slane %v53, %v252
    %v254 = vlaneseq
    %v255 = vshrl.u32 %v254, 7
    %v256 = vsub.s32 6, %v255
    %v257 = vrot.slane %v53, %v256
    %v258 = vlaneseq
    %v259 = vshrl.u32 %v258, 7
    %v260 = vsub.s32 7, %v259
    %v261 = vrot.slane %v53, %v260
    %v262 = vlaneseq
    %v263 = vshrl.u32 %v262, 7
    %v264 = vsub.s32 0, %v263
    %v265 = vrot.slane %v54, %v264
    %v266 = vlaneseq
    %v267 = vshrl.u32 %v266, 7
    %v268 = vsub.s32 1, %v267
    %v269 = vrot.slane %v54, %v268
    %v270 = vlaneseq
    %v271 = vshrl.u32 %v270, 7
    %v272 = vsub.s32 2, %v271
    %v273 = vrot.slane %v54, %v272
    %v274 = vlaneseq
    %v275 = vshrl.u32 %v274, 7
    %v276 = vsub.s32 3, %v275
    %v277 = vrot.slane %v54, %v276
    %v278 = vlaneseq
    %v279 = vshrl.u32 %v278, 7
    %v280 = vsub.s32 4, %v279
    %v281 = vrot.slane %v54, %v280
    %v282 = vlaneseq
    %v283 = vshrl.u32 %v282, 7
    %v284 = vsub.s32 5, %v283
    %v285 = vrot.slane %v54, %v284
    %v286 = vlaneseq
    %v287 = vshrl.u32 %v286, 7
    %v288 = vsub.s32 6, %v287
    %v289 = vrot.slane %v54, %v288
    %v290 = vlaneseq
    %v291 = vshrl.u32 %v290, 7
    %v292 = vsub.s32 7, %v291
    %v293 = vrot.slane %v54, %v292
    %v310 = vsel %vm138, %v233, inf
    %v311 = vsel %vm138, %v237, inf
    %v312 = vsel %vm138, %v241, inf
    %v313 = vsel %vm138, %v245, inf
    %v314 = vsel %vm138, %v249, inf
    %v315 = vmin.f32 %v310, %v314
    %v316 = vsel %vm138, %v253, inf
    %v317 = vmin.f32 %v311, %v316
    %v318 = vsel %vm138, %v257, inf
    %v319 = vmin.f32 %v312, %v318
    %v320 = vsel %vm138, %v261, inf
    %v321 = vmin.f32 %v313, %v320
    %v322 = vsel %vm138, %v265, inf
    %v323 = vmin.f32 %v315, %v322
    %v324 = vsel %vm138, %v269, inf
    %v325 = vmin.f32 %v317, %v324
    %v326 = vsel %vm138, %v273, inf
    %v327 = vmin.f32 %v319, %v326
    %v328 = vsel %vm138, %v277, inf
    %v329 = vmin.f32 %v321, %v328
    %v330 = vsel %vm138, %v281, inf
    %v331 = vmin.f32 %v323, %v330
    %v332 = vsel %vm138, %v285, inf
    %v333 = vmin.f32 %v325, %v332
    %v334 = vsel %vm138, %v289, inf
    %v335 = vmin.f32 %v327, %v334
    %v336 = vsel %vm138, %v293, inf
    %v337 = vmin.f32 %v329, %v336
    %v338 = vmin.f32 %v331, %v333
    %v339 = vmin.f32 %v335, %v337
    %v340 = vmin.f32 %v338, %v339
    %341 = vmin.xlane.f32.xlu0 %v340
    %v342 = vpop.xlane.xlu0 %341
    %v343 = vrot.slane %v342, 4
    %v344 = vmin.f32 %v342, %v343
    %v345 = vrot.slane %v344, 2
    %v346 = vmin.f32 %v344, %v345
    %v347 = vrot.slane %v346, 1
    %v348 = vmin.f32 %v346, %v347
    %s349 = vtos %v348
    %v350 = vstv %s349
    %v351 = vmin.f32 %v227, %v350
    %352 = vst.msk [vmem:[#allocation10] sm:$0x1] %vm181, %v351
    %v353 = vld [vmem:[#allocation11] sm:$0x1]
    %v354 = vsel %vm138, %v233, -inf
    %v355 = vsel %vm138, %v237, -inf
    %v356 = vsel %vm138, %v241, -inf
    %v357 = vsel %vm138, %v245, -inf
    %v358 = vsel %vm138, %v249, -inf
    %v359 = vmax.f32 %v354, %v358
    %v360 = vsel %vm138, %v253, -inf
    %v361 = vmax.f32 %v355, %v360
    %v362 = vsel %vm138, %v257, -inf
    %v363 = vmax.f32 %v356, %v362
    %v364 = vsel %vm138, %v261, -inf
    %v365 = vmax.f32 %v357, %v364
    %v366 = vsel %vm138, %v265, -inf
    %v367 = vmax.f32 %v359, %v366
    %v368 = vsel %vm138, %v269, -inf
    %v369 = vmax.f32 %v361, %v368
    %v370 = vsel %vm138, %v273, -inf
    %v371 = vmax.f32 %v363, %v370
    %v372 = vsel %vm138, %v277, -inf
    %v373 = vmax.f32 %v365, %v372
    %v374 = vsel %vm138, %v281, -inf
    %v375 = vmax.f32 %v367, %v374
    %v376 = vsel %vm138, %v285, -inf
    %v377 = vmax.f32 %v369, %v376
    %v378 = vsel %vm138, %v289, -inf
    %v379 = vmax.f32 %v371, %v378
    %v380 = vsel %vm138, %v293, -inf
    %v381 = vmax.f32 %v373, %v380
    %v382 = vmax.f32 %v375, %v377
    %v383 = vmax.f32 %v379, %v381
    %v384 = vmax.f32 %v382, %v383
    %385 = vmax.xlane.f32.xlu0 %v384
    %v386 = vpop.xlane.xlu0 %385
    %v387 = vrot.slane %v386, 4
    %v388 = vmax.f32 %v386, %v387
    %v389 = vrot.slane %v388, 2
    %v390 = vmax.f32 %v388, %v389
    %v391 = vrot.slane %v390, 1
    %v392 = vmax.f32 %v390, %v391
    %s393 = vtos %v392
    %v394 = vstv %s393
    %v395 = vmax.f32 %v353, %v394
    %396 = vst.msk [vmem:[#allocation11] sm:$0x1] %vm181, %v395
    // Predicated region
    $region22: #{tpu_custom_call.1} parent=1 // pred_check
      %p397 = pneg %p42
    $region23: #{tpu_custom_call.1} parent=1 // pred_check_branch
      %399 = sbr.rel (%p397) target = $region25
    $region24: #{tpu_custom_call.1} parent=1 // pred_region
      %v400 = vld [vmem:[#allocation8] sm:$0x1]
      %v401 = vld [vmem:[#allocation7] sm:$0x1]
      %v402 = vsub.f32 %v400, %v401
      %v403 = vadd.f32 %v402, 1e-08
      %v404 = vrcp.pop %v403
      %v405 = vmul.f32 256.0, %v404
      %406 = vst.msk [vmem:[#allocation8] sm:$0x1] %vm181, %v405
      %v407 = vld [vmem:[#allocation11] sm:$0x1]
      %v408 = vld [vmem:[#allocation10] sm:$0x1]
      %v409 = vsub.f32 %v407, %v408
      %v410 = vadd.f32 %v409, 1e-08
      %v411 = vrcp.pop %v410
      %v412 = vmul.f32 256.0, %v411
      %413 = vst.msk [vmem:[#allocation11] sm:$0x1] %vm181, %v412
    $region25: #{tpu_custom_call.1} parent=1 // pred_fallthru
      _
    // Predicated region
    $region26: #{tpu_custom_call.1} parent=1 // pred_check
      _
    $region27: #{tpu_custom_call.1} parent=1 // pred_check_branch
      %415 = sbr.rel (0) target = $region29
    $region28: #{tpu_custom_call.1} parent=1 // pred_region
      %s417 = ssub.s32 16, 16
      %418 = vsyncadd [#allocation4], %s417
      %s420 = sshll.u32 [#allocation7], 4
      %s421 = int_to_ptr.vmem [resolvable:$true] %s420
      %423 = dma.vmem_to_hbm [thread:$0]  %s421, 16, %s2, [#allocation4]
    $region29: #{tpu_custom_call.1} parent=1 // pred_fallthru
      _
    // Predicated region
    $region30: #{tpu_custom_call.1} parent=1 // pred_check
      _
    $region31: #{tpu_custom_call.1} parent=1 // pred_check_branch
      %425 = sbr.rel (0) target = $region33
    $region32: #{tpu_custom_call.1} parent=1 // pred_region
      %s427 = ssub.s32 16, 16
      %428 = vsyncadd [#allocation9], %s427
      %s430 = sshll.u32 [#allocation8], 4
      %s431 = int_to_ptr.vmem [resolvable:$true] %s430
      %433 = dma.vmem_to_hbm [thread:$0]  %s431, 16, %s3, [#allocation9]
    $region33: #{tpu_custom_call.1} parent=1 // pred_fallthru
      _
    // Predicated region
    $region34: #{tpu_custom_call.1} parent=1 // pred_check
      _
    $region35: #{tpu_custom_call.1} parent=1 // pred_check_branch
      %435 = sbr.rel (0) target = $region37
    $region36: #{tpu_custom_call.1} parent=1 // pred_region
      %s437 = ssub.s32 16, 16
      %438 = vsyncadd [#allocation9], %s437
      %s440 = sshll.u32 [#allocation10], 4
      %s441 = int_to_ptr.vmem [resolvable:$true] %s440
      %443 = dma.vmem_to_hbm [thread:$0]  %s441, 16, %s4, [#allocation9]
    $region37: #{tpu_custom_call.1} parent=1 // pred_fallthru
      _
    // Predicated region
    $region38: #{tpu_custom_call.1} parent=1 // pred_check
      _
    $region39: #{tpu_custom_call.1} parent=1 // pred_check_branch
      %445 = sbr.rel (0) target = $region41
    $region40: #{tpu_custom_call.1} parent=1 // pred_region
      %s447 = ssub.s32 16, 16
      %448 = vsyncadd [#allocation12], %s447
      %s450 = sshll.u32 [#allocation11], 4
      %s451 = int_to_ptr.vmem [resolvable:$true] %s450
      %453 = dma.vmem_to_hbm [thread:$0]  %s451, 16, %s5, [#allocation12]
    $region41: #{tpu_custom_call.1} parent=1 // pred_fallthru
      _
    // Predicated region
    $region42: #{tpu_custom_call.1} parent=1 // pred_check
      _
    $region43: #{tpu_custom_call.1} parent=1 // pred_check_branch
      %455 = sbr.rel (0) target = $region45
    $region44: #{tpu_custom_call.1} parent=1 // pred_region
      %456 = dma.done [#allocation4], 16
    $region45: #{tpu_custom_call.1} parent=1 // pred_fallthru
      _
    // Predicated region
    $region46: #{tpu_custom_call.1} parent=1 // pred_check
      _
    $region47: #{tpu_custom_call.1} parent=1 // pred_check_branch
      %458 = sbr.rel (0) target = $region49
    $region48: #{tpu_custom_call.1} parent=1 // pred_region
      %459 = dma.done [#allocation9], 16
    $region49: #{tpu_custom_call.1} parent=1 // pred_fallthru
      _
    // Predicated region
    $region50: #{tpu_custom_call.1} parent=1 // pred_check
      _
    $region51: #{tpu_custom_call.1} parent=1 // pred_check_branch
      %461 = sbr.rel (0) target = $region53
    $region52: #{tpu_custom_call.1} parent=1 // pred_region
      %462 = dma.done [#allocation9], 16
    $region53: #{tpu_custom_call.1} parent=1 // pred_fallthru
      _
    // Predicated region
    $region54: #{tpu_custom_call.1} parent=1 // pred_check
      _
    $region55: #{tpu_custom_call.1} parent=1 // pred_check_branch
      %464 = sbr.rel (0) target = $region57
    $region56: #{tpu_custom_call.1} parent=1 // pred_region
      %465 = dma.done [#allocation12], 16
    $region57: #{tpu_custom_call.1} parent=1 // pred_fallthru
      _
    %466 = vsyncpa [#allocation3], 1
    %467 = vsyncpa [#allocation6], 1
    %468 = vsyncpa [#allocation4], 1
    %469 = vsyncpa [#allocation9], 1
    %470 = vsyncpa [#allocation12], 1

</llo_original>
